<compile_context>
chip_gen: v6e
topology: v6e:2x2x1
jax: 0.10.0
libtpu: 0.0.40
codegen_flags: <defaults>
</compile_context>

<pallas_src>
import math
import functools
import numpy as np
import jax
import jax.numpy as jnp
from jax.experimental import pallas as pl
from jax.experimental.pallas import tpu as pltpu


# --------------------------------------------------------------------------
# generation-aware configuration
# --------------------------------------------------------------------------

def _tpu_vmem_bytes():
    try:
        cap = int(pltpu.get_tpu_info().vmem_capacity_bytes)
        if cap > 0:
            return cap
    except Exception:
        pass
    return 64 * 1024 * 1024          # conservative fallback (v7x-sized)


_VMEM_LIMIT = int(_tpu_vmem_bytes() * 3 // 4)          # ~96 MiB v5e/v6e, ~48 MiB v7x
_LARGE_VMEM = _VMEM_LIMIT >= 64 * 1024 * 1024          # True on v5e/v6e


def _mxu_is_256():
    # v6e/v7x have 2x256^2 MXUs; v2-v5 are 128-wide.
    try:
        kind = jax.devices()[0].device_kind.lower()
        return not any(v in kind for v in ("v2", "v3", "v4", "v5"))
    except Exception:
        return True


_ATTN_TILE_BASE = 256 if _mxu_is_256() else 128
_TM_CAP = 512 if _LARGE_VMEM else 256
_TN_CAP = 1024 if _LARGE_VMEM else 512
_TF_CAP = 1024 if _LARGE_VMEM else 512
_TV_CAP = 1024 if _LARGE_VMEM else 512


def _cparams(*sem):
    return pltpu.CompilerParams(dimension_semantics=tuple(sem),
                                vmem_limit_bytes=_VMEM_LIMIT)


def _round_up(x, m):
    return (x + m - 1) // m * m


def _choose_tile(dim, cap, align):
    """Largest multiple of `align` <= cap that divides `dim`; else `dim`."""
    if dim <= cap:
        return dim
    t = (cap // align) * align
    while t >= align:
        if dim % t == 0:
            return t
        t -= align
    return dim


def _pad_dim(x, target, axis):
    pad = target - x.shape[axis]
    if pad == 0:
        return x
    cfg = [(0, 0)] * x.ndim
    cfg[axis] = (0, pad)
    return jnp.pad(x, cfg)


# --------------------------------------------------------------------------
# Pallas kernels
# --------------------------------------------------------------------------

def _linear_kernel(x_ref, w_ref, b_ref, o_ref):
    acc = jnp.dot(x_ref[...], w_ref[...], preferred_element_type=jnp.float32)
    o_ref[...] = (acc + b_ref[...].astype(jnp.float32)).astype(o_ref.dtype)


def linear(x, w, b):
    # x: [M, K], w: [K, N] bf16, b: [1, N] f32 -> [M, N] bf16
    M, K = x.shape
    N = w.shape[1]
    M_pad = _round_up(M, 16)
    xp = _pad_dim(x, M_pad, 0).astype(jnp.bfloat16)
    tm = _choose_tile(M_pad, _TM_CAP, 16)
    tn = _choose_tile(N, _TN_CAP, 128)
    out = pl.pallas_call(
        _linear_kernel,
        out_shape=jax.ShapeDtypeStruct((M_pad, N), jnp.bfloat16),
        grid=(M_pad // tm, N // tn),
        in_specs=[pl.BlockSpec((tm, K), lambda i, j: (i, 0)),
                  pl.BlockSpec((K, tn), lambda i, j: (0, j)),
                  pl.BlockSpec((1, tn), lambda i, j: (0, j))],
        out_specs=pl.BlockSpec((tm, tn), lambda i, j: (i, j)),
        compiler_params=_cparams("parallel", "parallel"),
    )(xp, w, b)
    return out[:M]


def _ln_kernel(x_ref, g_ref, b_ref, o_ref):
    x = x_ref[...].astype(jnp.float32)
    mu = jnp.mean(x, axis=-1, keepdims=True)
    xc = x - mu
    var = jnp.mean(xc * xc, axis=-1, keepdims=True)
    y = xc * jax.lax.rsqrt(var + 1e-12)
    o_ref[...] = (y * g_ref[...].astype(jnp.float32)
                  + b_ref[...].astype(jnp.float32)).astype(o_ref.dtype)


def layer_norm(x, g, b):
    M, D = x.shape
    M_pad = _round_up(M, 16)
    xp = _pad_dim(x, M_pad, 0).astype(jnp.bfloat16)
    tm = _choose_tile(M_pad, _TM_CAP, 16)
    out = pl.pallas_call(
        _ln_kernel,
        out_shape=jax.ShapeDtypeStruct((M_pad, D), jnp.bfloat16),
        grid=(M_pad // tm,),
        in_specs=[pl.BlockSpec((tm, D), lambda i: (i, 0)),
                  pl.BlockSpec((1, D), lambda i: (0, 0)),
                  pl.BlockSpec((1, D), lambda i: (0, 0))],
        out_specs=pl.BlockSpec((tm, D), lambda i: (i, 0)),
        compiler_params=_cparams("parallel"),
    )(xp, g, b)
    return out[:M]


def _linear_add_ln_kernel(x_ref, w_ref, b_ref, r_ref, g_ref, bln_ref, o_ref):
    # out = LayerNorm(x @ w + b + residual) -- fuses the attention o-proj with
    # the residual add and LayerNorm (no intermediate HBM round trip).
    y = jnp.dot(x_ref[...], w_ref[...], preferred_element_type=jnp.float32)
    y = y + b_ref[...].astype(jnp.float32) + r_ref[...].astype(jnp.float32)
    mu = jnp.mean(y, axis=-1, keepdims=True)
    yc = y - mu
    var = jnp.mean(yc * yc, axis=-1, keepdims=True)
    o_ref[...] = (yc * jax.lax.rsqrt(var + 1e-12) * g_ref[...].astype(jnp.float32)
                  + bln_ref[...].astype(jnp.float32)).astype(o_ref.dtype)


def linear_add_layer_norm(x, w, b, residual, g, bln):
    # x, residual: [M, D]; w: [D, D]; output LayerNorm(x @ w + b + residual)
    M, D = x.shape
    M_pad = _round_up(M, 16)
    xp = _pad_dim(x, M_pad, 0).astype(jnp.bfloat16)
    rp = _pad_dim(residual, M_pad, 0).astype(jnp.bfloat16)
    tm = _choose_tile(M_pad, _TM_CAP, 16)
    out = pl.pallas_call(
        _linear_add_ln_kernel,
        out_shape=jax.ShapeDtypeStruct((M_pad, D), jnp.bfloat16),
        grid=(M_pad // tm,),
        in_specs=[pl.BlockSpec((tm, D), lambda i: (i, 0)),
                  pl.BlockSpec((D, D), lambda i: (0, 0)),
                  pl.BlockSpec((1, D), lambda i: (0, 0)),
                  pl.BlockSpec((tm, D), lambda i: (i, 0)),
                  pl.BlockSpec((1, D), lambda i: (0, 0)),
                  pl.BlockSpec((1, D), lambda i: (0, 0))],
        out_specs=pl.BlockSpec((tm, D), lambda i: (i, 0)),
        compiler_params=_cparams("parallel"),
    )(xp, w, b, rp, g, bln)
    return out[:M]


def _ffn_ln_kernel(x_ref, w1_ref, b1_ref, w2_ref, b2_ref, g_ref, bln_ref,
                   o_ref, acc_ref):
    # out = LayerNorm(gelu(x @ w1 + b1) @ w2 + b2 + x), tiled over the F axis
    # so w1/w2 never need to be fully resident in VMEM (v7x 64 MiB safe).
    fi = pl.program_id(1)

    @pl.when(fi == 0)
    def _():
        acc_ref[...] = jnp.zeros_like(acc_ref)

    h = jnp.dot(x_ref[...], w1_ref[...], preferred_element_type=jnp.float32)
    h = jax.nn.gelu(h + b1_ref[...].astype(jnp.float32))
    acc_ref[...] += jnp.dot(h.astype(jnp.bfloat16), w2_ref[...],
                            preferred_element_type=jnp.float32)

    @pl.when(fi == pl.num_programs(1) - 1)
    def _():
        y = (acc_ref[...] + b2_ref[...].astype(jnp.float32)
             + x_ref[...].astype(jnp.float32))
        mu = jnp.mean(y, axis=-1, keepdims=True)
        yc = y - mu
        var = jnp.mean(yc * yc, axis=-1, keepdims=True)
        o_ref[...] = (yc * jax.lax.rsqrt(var + 1e-12) * g_ref[...].astype(jnp.float32)
                      + bln_ref[...].astype(jnp.float32)).astype(o_ref.dtype)


def ffn_add_layer_norm(x, w1, b1, w2, b2, g, bln):
    M, D = x.shape
    F = w1.shape[1]
    M_pad = _round_up(M, 16)
    xp = _pad_dim(x, M_pad, 0).astype(jnp.bfloat16)
    tm = _choose_tile(M_pad, 256, 16)
    tf = _choose_tile(F, _TF_CAP, 128)
    out = pl.pallas_call(
        _ffn_ln_kernel,
        out_shape=jax.ShapeDtypeStruct((M_pad, D), jnp.bfloat16),
        grid=(M_pad // tm, F // tf),
        in_specs=[pl.BlockSpec((tm, D), lambda i, f: (i, 0)),
                  pl.BlockSpec((D, tf), lambda i, f: (0, f)),
                  pl.BlockSpec((1, tf), lambda i, f: (0, f)),
                  pl.BlockSpec((tf, D), lambda i, f: (f, 0)),
                  pl.BlockSpec((1, D), lambda i, f: (0, 0)),
                  pl.BlockSpec((1, D), lambda i, f: (0, 0)),
                  pl.BlockSpec((1, D), lambda i, f: (0, 0))],
        out_specs=pl.BlockSpec((tm, D), lambda i, f: (i, 0)),
        scratch_shapes=[pltpu.VMEM((tm, D), jnp.float32)],
        compiler_params=_cparams("parallel", "arbitrary"),
    )(xp, w1, b1, w2, b2, g, bln)
    return out[:M]


def _flash_attn_kernel(q_ref, k_ref, v_ref, mask_ref, o_ref,
                       m_sc, l_sc, acc_sc, *, causal, scale, tq, tkv):
    ki = pl.program_id(2)

    @pl.when(ki == 0)
    def _():
        m_sc[...] = jnp.full_like(m_sc, -1e30)
        l_sc[...] = jnp.zeros_like(l_sc)
        acc_sc[...] = jnp.zeros_like(acc_sc)

    # fold 1/sqrt(d) into q (O(Sq*D) instead of O(Sq*Skv))
    q = (q_ref[0].astype(jnp.float32) * scale).astype(jnp.bfloat16)
    # TODO(synk): if MLIR shows an XLU transpose here, feed K pre-transposed
    # ([B, D, Skv]) from the fused QKV projection instead.
    s = jax.lax.dot_general(q, k_ref[0], (((1,), (1,)), ((), ())),
                            preferred_element_type=jnp.float32)       # [TQ, TKV]

    keep = mask_ref[0] > 0.5                                          # [1, TKV]
    if causal:
        qpos = pl.program_id(1) * tq + jax.lax.broadcasted_iota(jnp.int32, s.shape, 0)
        kpos = ki * tkv + jax.lax.broadcasted_iota(jnp.int32, s.shape, 1)
        keep = jnp.logical_and(keep, qpos >= kpos)
    s = jnp.where(keep, s, -1e30)

    m_prev = m_sc[...]
    m_new = jnp.maximum(m_prev, jnp.max(s, axis=-1, keepdims=True))
    alpha = jnp.exp(m_prev - m_new)
    p = jnp.exp(s - m_new)
    l_sc[...] = alpha * l_sc[...] + jnp.sum(p, axis=-1, keepdims=True)
    acc_sc[...] = alpha * acc_sc[...] + jnp.dot(
        p.astype(jnp.bfloat16), v_ref[0], preferred_element_type=jnp.float32)
    m_sc[...] = m_new

    @pl.when(ki == pl.num_programs(2) - 1)
    def _():
        # guard fully-masked rows (padded queries / all-zero mask rows)
        l = l_sc[...]
        l = jnp.where(l > 0.0, l, 1.0)
        o_ref[0] = (acc_sc[...] * pl.reciprocal(l, approx=True)).astype(o_ref.dtype)


def _attn_tile(seq, base):
    if seq <= 128:
        return _round_up(seq, 16)
    if seq % base == 0 or seq >= 2 * base:
        return base
    return 128


def flash_attention(q, k, v, kv_mask, *, causal):
    # q: [B, Sq, D], k/v: [B, Skv, D], kv_mask: [B, Skv] (1 = keep)
    # TODO(synk): single-head stand-in; the real KVPLM/MolT5 attention is
    # multi-head ([B, H, S, d_head]) with per-head scaling.
    B, Sq, D = q.shape
    Skv = k.shape[1]
    TQ = _attn_tile(Sq, _ATTN_TILE_BASE)
    TKV = _attn_tile(Skv, _ATTN_TILE_BASE)
    Sq_p = _round_up(Sq, TQ)
    Skv_p = _round_up(Skv, TKV)
    qp = _pad_dim(q, Sq_p, 1).astype(jnp.bfloat16)
    kp = _pad_dim(k, Skv_p, 1).astype(jnp.bfloat16)
    vp = _pad_dim(v, Skv_p, 1).astype(jnp.bfloat16)
    mp = _pad_dim(kv_mask.astype(jnp.float32), Skv_p, 1)[:, None, :]   # [B,1,Skv_p]

    kernel = functools.partial(_flash_attn_kernel, causal=causal,
                               scale=1.0 / math.sqrt(D), tq=TQ, tkv=TKV)
    out = pl.pallas_call(
        kernel,
        out_shape=jax.ShapeDtypeStruct((B, Sq_p, D), jnp.bfloat16),
        grid=(B, Sq_p // TQ, Skv_p // TKV),
        in_specs=[pl.BlockSpec((1, TQ, D), lambda b, qi, ki: (b, qi, 0)),
                  pl.BlockSpec((1, TKV, D), lambda b, qi, ki: (b, ki, 0)),
                  pl.BlockSpec((1, TKV, D), lambda b, qi, ki: (b, ki, 0)),
                  pl.BlockSpec((1, 1, TKV), lambda b, qi, ki: (b, 0, ki))],
        out_specs=pl.BlockSpec((1, TQ, D), lambda b, qi, ki: (b, qi, 0)),
        scratch_shapes=[pltpu.VMEM((TQ, 1), jnp.float32),
                        pltpu.VMEM((TQ, 1), jnp.float32),
                        pltpu.VMEM((TQ, D), jnp.float32)],
        compiler_params=_cparams("parallel", "parallel", "arbitrary"),
    )(qp, kp, vp, mp)
    return out[:, :Sq, :]


def _lmhead_ce_kernel(h_ref, w_ref, b_ref, lbl_ref,
                      logits_ref, loss_ref, valid_ref,
                      m_sc, l_sc, t_sc, *, tv):
    j = pl.program_id(1)

    @pl.when(j == 0)
    def _():
        m_sc[...] = jnp.full_like(m_sc, -1e30)
        l_sc[...] = jnp.zeros_like(l_sc)
        t_sc[...] = jnp.zeros_like(t_sc)

    logits = jnp.dot(h_ref[...], w_ref[...], preferred_element_type=jnp.float32)
    logits = logits + b_ref[...].astype(jnp.float32)                  # [tm, tv] f32
    logits_ref[...] = logits.astype(logits_ref.dtype)                 # bf16 store

    lbl = lbl_ref[...]                                                # [tm, 1] int32
    col = j * tv + jax.lax.broadcasted_iota(jnp.int32, logits.shape, 1)
    t_sc[...] += jnp.sum(jnp.where(col == lbl, logits, 0.0), axis=-1, keepdims=True)

    m_prev = m_sc[...]
    m_new = jnp.maximum(m_prev, jnp.max(logits, axis=-1, keepdims=True))
    l_sc[...] = (jnp.exp(m_prev - m_new) * l_sc[...]
                 + jnp.sum(jnp.exp(logits - m_new), axis=-1, keepdims=True))
    m_sc[...] = m_new

    @pl.when(j == pl.num_programs(1) - 1)
    def _():
        lse = m_sc[...] + jnp.log(l_sc[...])
        valid = (lbl != -100).astype(jnp.float32)
        loss_ref[...] = (lse - t_sc[...]) * valid
        valid_ref[...] = valid


def lm_head_cross_entropy(h, w, b, labels):
    # Fused LM-head matmul + token CE: the [M, V] logits are written exactly
    # once (bf16) and never re-read from HBM (online LSE over vocab tiles).
    M, D = h.shape
    V = w.shape[1]
    M_pad = _round_up(M, 16)
    hp = _pad_dim(h, M_pad, 0).astype(jnp.bfloat16)
    lbl = labels.reshape(M, 1).astype(jnp.int32)
    if M_pad != M:
        lbl = jnp.pad(lbl, ((0, M_pad - M), (0, 0)), constant_values=-100)

    tm = _choose_tile(M_pad, _TM_CAP, 16)
    tv = _choose_tile(V, _TV_CAP, 128)
    kernel = functools.partial(_lmhead_ce_kernel, tv=tv)
    logits, losses, valid = pl.pallas_call(
        kernel,
        out_shape=(jax.ShapeDtypeStruct((M_pad, V), jnp.bfloat16),
                   jax.ShapeDtypeStruct((M_pad, 1), jnp.float32),
                   jax.ShapeDtypeStruct((M_pad, 1), jnp.float32)),
        grid=(M_pad // tm, V // tv),
        in_specs=[pl.BlockSpec((tm, D), lambda i, j: (i, 0)),
                  pl.BlockSpec((D, tv), lambda i, j: (0, j)),
                  pl.BlockSpec((1, tv), lambda i, j: (0, j)),
                  pl.BlockSpec((tm, 1), lambda i, j: (i, 0))],
        out_specs=(pl.BlockSpec((tm, tv), lambda i, j: (i, j)),
                   pl.BlockSpec((tm, 1), lambda i, j: (i, 0)),
                   pl.BlockSpec((tm, 1), lambda i, j: (i, 0))),
        scratch_shapes=[pltpu.VMEM((tm, 1), jnp.float32),
                        pltpu.VMEM((tm, 1), jnp.float32),
                        pltpu.VMEM((tm, 1), jnp.float32)],
        compiler_params=_cparams("parallel", "arbitrary"),
    )(hp, w, b, lbl)
    loss = jnp.sum(losses) / jnp.maximum(jnp.sum(valid), 1.0)
    return loss, logits[:M]


# --------------------------------------------------------------------------
# Parameters (deterministic synthetic init; shapes follow the module's __init__)
# --------------------------------------------------------------------------

def init_params(key, vocab, d_enc, d_dec, d_ff, max_pos):
    keys = jax.random.split(key, 24)
    it = iter(range(24))

    def nrm(shape, scale=0.02):
        return (scale * jax.random.normal(keys[next(it)], shape)).astype(jnp.bfloat16)

    def ones(shape):
        return jnp.ones(shape, jnp.float32)

    def zeros(shape):
        return jnp.zeros(shape, jnp.float32)

    p = {}
    # encoder (KVPLM / BERT-like, 1-layer stand-in) -- fused QKV weight
    p["enc_tok_emb"] = nrm((vocab, d_enc))
    p["enc_pos_emb"] = nrm((max_pos, d_enc))
    p["enc_ln_emb_g"] = ones((1, d_enc)); p["enc_ln_emb_b"] = zeros((1, d_enc))
    p["enc_qkv_w"] = nrm((d_enc, 3 * d_enc)); p["enc_qkv_b"] = zeros((1, 3 * d_enc))
    p["enc_o_w"] = nrm((d_enc, d_enc)); p["enc_o_b"] = zeros((1, d_enc))
    p["enc_ln1_g"] = ones((1, d_enc)); p["enc_ln1_b"] = zeros((1, d_enc))
    p["enc_ffn_w1"] = nrm((d_enc, d_ff)); p["enc_ffn_b1"] = zeros((1, d_ff))
    p["enc_ffn_w2"] = nrm((d_ff, d_enc)); p["enc_ffn_b2"] = zeros((1, d_enc))
    p["enc_ln2_g"] = ones((1, d_enc)); p["enc_ln2_b"] = zeros((1, d_enc))
    # encoder_decoder_proj: nn.Linear(encoder.output_dim, decoder.hidden_size)
    p["proj_w"] = nrm((d_enc, d_dec)); p["proj_b"] = zeros((1, d_dec))
    # decoder (T5-like, 1-layer stand-in) + LM head
    p["dec_tok_emb"] = nrm((vocab, d_dec))
    p["dec_pos_emb"] = nrm((max_pos, d_dec))
    p["dec_sqkv_w"] = nrm((d_dec, 3 * d_dec)); p["dec_sqkv_b"] = zeros((1, 3 * d_dec))
    p["dec_so_w"] = nrm((d_dec, d_dec)); p["dec_so_b"] = zeros((1, d_dec))
    p["dec_ln1_g"] = ones((1, d_dec)); p["dec_ln1_b"] = zeros((1, d_dec))
    p["dec_cq_w"] = nrm((d_dec, d_dec)); p["dec_cq_b"] = zeros((1, d_dec))
    p["dec_ckv_w"] = nrm((d_dec, 2 * d_dec)); p["dec_ckv_b"] = zeros((1, 2 * d_dec))
    p["dec_co_w"] = nrm((d_dec, d_dec)); p["dec_co_b"] = zeros((1, d_dec))
    p["dec_ln2_g"] = ones((1, d_dec)); p["dec_ln2_b"] = zeros((1, d_dec))
    p["dec_ffn_w1"] = nrm((d_dec, d_ff)); p["dec_ffn_b1"] = zeros((1, d_ff))
    p["dec_ffn_w2"] = nrm((d_ff, d_dec)); p["dec_ffn_b2"] = zeros((1, d_dec))
    p["dec_ln3_g"] = ones((1, d_dec)); p["dec_ln3_b"] = zeros((1, d_dec))
    p["lm_head_w"] = nrm((d_dec, vocab)); p["lm_head_b"] = zeros((1, vocab))
    return p


# --------------------------------------------------------------------------
# Glue: _concat_smi_text (ragged, data-dependent packing; host numpy, mirrors
# the PyTorch reference -- max_len bucketed to fixed power-of-two sizes so
# shapes stay stable and stay aligned to the bf16 (16,128) min tile)
# --------------------------------------------------------------------------

def concat_smi_text(mol_input_ids, mol_attention_mask, batch, text_input_ids):
    # TODO(synk): ragged per-molecule packing is data-dependent host-side work
    # with no clean Pallas equivalent; done in numpy like the PyTorch loop.
    mol_input_ids = np.asarray(mol_input_ids)
    mol_attention_mask = np.asarray(mol_attention_mask)
    batch = np.asarray(batch)
    text_input_ids = np.asarray(text_input_ids)

    bs = int(batch.max()) + 1
    num_atoms = mol_attention_mask.sum(axis=1)
    out_ids, out_mask = [], []
    max_len = 0
    for b in range(bs):
        idxs = np.where(batch == b)[0]
        pieces = [mol_input_ids[i, : num_atoms[i] - 1] for i in idxs] + [text_input_ids[b, :]]
        out_ids.append(np.concatenate(pieces, axis=0))
        max_len = max(max_len, out_ids[-1].shape[0])
    max_len = min(max_len, 512)
    bucket = 16                                    # fixed buckets: 16,32,...,512
    while bucket < max_len:
        bucket *= 2
    max_len = min(bucket, 512)
    for b in range(bs):
        L = out_ids[b].shape[0]
        if L < max_len:
            out_mask.append(np.concatenate([np.ones(L), np.zeros(max_len - L)], axis=0))
            out_ids[b] = np.concatenate(
                [out_ids[b], np.zeros(max_len - L, dtype=out_ids[b].dtype)], axis=0)
        else:
            out_ids[b] = out_ids[b][:max_len]
            out_mask.append(np.ones(max_len))
    return (jnp.asarray(np.stack(out_ids, axis=0), dtype=jnp.int32),
            jnp.asarray(np.stack(out_mask, axis=0), dtype=jnp.float32))


# --------------------------------------------------------------------------
# Model forward
# --------------------------------------------------------------------------

def encode_text(params, input_ids, attention_mask):
    B, L = input_ids.shape
    D = params["enc_tok_emb"].shape[1]
    tok = params["enc_tok_emb"][input_ids].astype(jnp.float32)   # glue: gather (XLA)
    pos = params["enc_pos_emb"][:L][None, :, :].astype(jnp.float32)
    h = layer_norm((tok + pos).reshape(B * L, D),
                   params["enc_ln_emb_g"], params["enc_ln_emb_b"])        # [B*L, D] bf16

    qkv = linear(h, params["enc_qkv_w"], params["enc_qkv_b"])             # fused QKV
    q, k, v = [t.reshape(B, L, D) for t in jnp.split(qkv, 3, axis=-1)]
    a = flash_attention(q, k, v, attention_mask, causal=False)
    # o-proj fused with residual add + LayerNorm
    h = linear_add_layer_norm(a.reshape(B * L, D), params["enc_o_w"], params["enc_o_b"],
                              h, params["enc_ln1_g"], params["enc_ln1_b"])

    # FFN fused with residual add + LayerNorm (F-tiled)
    h = ffn_add_layer_norm(h, params["enc_ffn_w1"], params["enc_ffn_b1"],
                           params["enc_ffn_w2"], params["enc_ffn_b2"],
                           params["enc_ln2_g"], params["enc_ln2_b"])
    return h.reshape(B, L, D)


def _shift_right(labels, decoder_start_token_id=0):
    shifted = jnp.roll(labels, 1, axis=-1)
    shifted = shifted.at[:, 0].set(decoder_start_token_id)
    return jnp.where(shifted == -100, 0, shifted)


def decode(params, encoder_hidden, enc_attention_mask, decoder_attention_mask, labels):
    # TODO(synk): real MolT5 decoder uses multi-head attention, pre-LN RMSNorm
    # and relative position bias; this is a post-LN single-head stand-in.
    B, L, D = encoder_hidden.shape
    T = labels.shape[1]
    Tp = _round_up(T, 16)
    V = params["lm_head_w"].shape[1]

    labels_p = labels if Tp == T else jnp.pad(
        labels, ((0, 0), (0, Tp - T)), constant_values=-100)
    dec_mask_p = decoder_attention_mask if Tp == T else jnp.pad(
        decoder_attention_mask, ((0, 0), (0, Tp - T)))

    dec_input_ids = _shift_right(labels_p)
    tok = params["dec_tok_emb"][dec_input_ids].astype(jnp.float32)   # glue: gather
    pos = params["dec_pos_emb"][:Tp][None, :, :].astype(jnp.float32)
    h = (tok + pos).reshape(B * Tp, D).astype(jnp.bfloat16)

    # causal self-attention, keys also masked by decoder_attention_mask
    qkv = linear(h, params["dec_sqkv_w"], params["dec_sqkv_b"])
    q, k, v = [t.reshape(B, Tp, D) for t in jnp.split(qkv, 3, axis=-1)]
    a = flash_attention(q, k, v, dec_mask_p, causal=True)
    h = linear_add_layer_norm(a.reshape(B * Tp, D), params["dec_so_w"], params["dec_so_b"],
                              h, params["dec_ln1_g"], params["dec_ln1_b"])

    # cross-attention to (projected) encoder outputs (fused K/V projection)
    q = linear(h, params["dec_cq_w"], params["dec_cq_b"]).reshape(B, Tp, D)
    kv = linear(encoder_hidden.reshape(B * L, D), params["dec_ckv_w"], params["dec_ckv_b"])
    k, v = [t.reshape(B, L, D) for t in jnp.split(kv, 2, axis=-1)]
    c = flash_attention(q, k, v, enc_attention_mask, causal=False)
    h = linear_add_layer_norm(c.reshape(B * Tp, D), params["dec_co_w"], params["dec_co_b"],
                              h, params["dec_ln2_g"], params["dec_ln2_b"])

    h = ffn_add_layer_norm(h, params["dec_ffn_w1"], params["dec_ffn_b1"],
                           params["dec_ffn_w2"], params["dec_ffn_b2"],
                           params["dec_ln3_g"], params["dec_ln3_b"])

    loss, logits = lm_head_cross_entropy(
        h, params["lm_head_w"], params["lm_head_b"], labels_p.reshape(B * Tp))
    logits = logits.reshape(B, Tp, V)[:, :T, :]
    return loss, logits


def molqa_forward(params, mol, batch, question, answer):
    # fusion_type == 'early' (KVPLM encoder path)
    input_ids, input_attention_mask = concat_smi_text(
        mol["input_ids"], mol["attention_mask"], batch, question["input_ids"])
    enc = encode_text(params, input_ids, input_attention_mask)
    # encoder_decoder_proj (encoder name != decoder name)
    B, L, _ = enc.shape
    enc = linear(enc.reshape(B * L, -1), params["proj_w"], params["proj_b"])
    enc = enc.reshape(B, L, -1)
    # labels = answer.input_ids.masked_fill(~answer.attention_mask.bool(), -100)
    labels = jnp.where(answer["attention_mask"].astype(bool), answer["input_ids"], -100)
    loss, logits = decode(params, enc, input_attention_mask,
                          answer["attention_mask"].astype(jnp.float32), labels)
    # TODO(synk): pretrained KVPLM/MolT5 weight loading, HF tokenizers and
    # beam-search generate() have no Pallas equivalent; synthetic-weight stand-in.
    return {"loss": loss, "logits": logits}


# --------------------------------------------------------------------------

if __name__ == "__main__":
    # lane-dense small shapes: hidden = 128 lanes, vocab = 2*128, ffn = 2*128
    VOCAB, D_ENC, D_DEC, D_FF, MAX_POS = 256, 128, 128, 256, 512
    params = init_params(jax.random.PRNGKey(0), VOCAB, D_ENC, D_DEC, D_FF, MAX_POS)

    k1, k2, k3 = jax.random.split(jax.random.PRNGKey(0), 3)
    num_mols, Lm, bs, Lq, La = 3, 6, 2, 5, 8
    mol = {
        "input_ids": jax.random.randint(k1, (num_mols, Lm), 1, VOCAB, dtype=jnp.int32),
        "attention_mask": jnp.array([[1, 1, 1, 1, 0, 0],
                                     [1, 1, 1, 1, 1, 0],
                                     [1, 1, 1, 0, 0, 0]], dtype=jnp.int32),
    }
    batch = jnp.array([0, 0, 1], dtype=jnp.int32)   # mol -> batch-element assignment
    question = {
        "input_ids": jax.random.randint(k2, (bs, Lq), 1, VOCAB, dtype=jnp.int32),
        "attention_mask": jnp.ones((bs, Lq), dtype=jnp.int32),
    }
    answer = {
        "input_ids": jax.random.randint(k3, (bs, La), 1, VOCAB, dtype=jnp.int32),
        "attention_mask": jnp.array([[1] * La, [1] * 6 + [0] * 2], dtype=jnp.int32),
    }

    out = molqa_forward(params, mol, batch, question, answer)
    jax.block_until_ready(out["loss"])
    jax.block_until_ready(out["logits"])
    assert out["logits"].shape == (bs, La, VOCAB)
    assert out["loss"].shape == ()
    assert bool(jnp.isfinite(out["loss"]))
    print("KERNEL_OK")
</pallas_src>

<mosaic_0001>
module attributes {stable_mosaic.version = 11 : i64} {
  func.func @_ln_kernel(%arg0: i32, %arg1: memref<32x128xbf16, #tpu.memory_space<vmem>>, %arg2: memref<1x128xf32, #tpu.memory_space<vmem>>, %arg3: memref<1x128xf32, #tpu.memory_space<vmem>>, %arg4: memref<32x128xbf16, #tpu.memory_space<vmem>>) attributes {dimension_semantics = [#tpu.dimension_semantics<parallel>], iteration_bounds = array<i64: 1>, scalar_prefetch = 0 : i64, scratch_operands = 0 : i64, tpu.core_type = #tpu.core_type<tc>, window_params = [{transform_indices = @transform_0, window_bounds = array<i64: 32, 128>}, {pipeline_mode = #tpu.pipeline_mode<synchronous>, transform_indices = @transform_1, window_bounds = array<i64: 1, 128>}, {pipeline_mode = #tpu.pipeline_mode<synchronous>, transform_indices = @transform_2, window_bounds = array<i64: 1, 128>}, {transform_indices = @transform_3, window_bounds = array<i64: 32, 128>}]} {
    %c0 = arith.constant 0 : index
    %c0_0 = arith.constant 0 : index
    %0 = vector.load %arg1[%c0, %c0_0] : memref<32x128xbf16, #tpu.memory_space<vmem>>, vector<32x128xbf16>
    %1 = arith.extf %0 : vector<32x128xbf16> to vector<32x128xf32>
    %cst = arith.constant dense<0.000000e+00> : vector<32xf32>
    %2 = vector.multi_reduction <add>, %1, %cst [1] : vector<32x128xf32> to vector<32xf32>
    %3 = vector.shape_cast %2 : vector<32xf32> to vector<32x1xf32>
    %cst_1 = arith.constant 1.280000e+02 : f32
    %4 = vector.broadcast %cst_1 : f32 to vector<32x1xf32>
    %5 = arith.divf %3, %4 : vector<32x1xf32>
    %6 = vector.broadcast %5 : vector<32x1xf32> to vector<32x128xf32>
    %7 = arith.subf %1, %6 : vector<32x128xf32>
    %8 = arith.mulf %7, %7 : vector<32x128xf32>
    %cst_2 = arith.constant dense<0.000000e+00> : vector<32xf32>
    %9 = vector.multi_reduction <add>, %8, %cst_2 [1] : vector<32x128xf32> to vector<32xf32>
    %10 = vector.shape_cast %9 : vector<32xf32> to vector<32x1xf32>
    %cst_3 = arith.constant 1.280000e+02 : f32
    %11 = vector.broadcast %cst_3 : f32 to vector<32x1xf32>
    %12 = arith.divf %10, %11 : vector<32x1xf32>
    %cst_4 = arith.constant 9.99999996E-13 : f32
    %13 = vector.broadcast %cst_4 : f32 to vector<32x1xf32>
    %14 = arith.addf %12, %13 : vector<32x1xf32>
    %15 = math.rsqrt %14 : vector<32x1xf32>
    %16 = vector.broadcast %15 : vector<32x1xf32> to vector<32x128xf32>
    %17 = arith.mulf %7, %16 : vector<32x128xf32>
    %c0_5 = arith.constant 0 : index
    %c0_6 = arith.constant 0 : index
    %18 = vector.load %arg2[%c0_5, %c0_6] : memref<1x128xf32, #tpu.memory_space<vmem>>, vector<1x128xf32>
    %19 = vector.broadcast %18 : vector<1x128xf32> to vector<32x128xf32>
    %20 = arith.mulf %17, %19 : vector<32x128xf32>
    %c0_7 = arith.constant 0 : index
    %c0_8 = arith.constant 0 : index
    %21 = vector.load %arg3[%c0_7, %c0_8] : memref<1x128xf32, #tpu.memory_space<vmem>>, vector<1x128xf32>
    %22 = vector.broadcast %21 : vector<1x128xf32> to vector<32x128xf32>
    %23 = arith.addf %20, %22 : vector<32x128xf32>
    %24 = arith.truncf %23 : vector<32x128xf32> to vector<32x128xbf16>
    %c0_9 = arith.constant 0 : index
    %c0_10 = arith.constant 0 : index
    %25 = vector.load %arg4[%c0_9, %c0_10] : memref<32x128xbf16, #tpu.memory_space<vmem>>, vector<32x128xbf16>
    tpu.vector_store %arg4[%c0_9, %c0_10], %24 {strides = array<i32>} : memref<32x128xbf16, #tpu.memory_space<vmem>>, vector<32x128xbf16>,
    return
  }
  func.func @transform_0(%arg0: i32) -> (i32, i32) {
    %c0_i32 = arith.constant 0 : i32
    %c0_i32_0 = arith.constant 0 : i32
    return %arg0, %c0_i32 : i32, i32
  }
  func.func @transform_1(%arg0: i32) -> (i32, i32) {
    %c0_i32 = arith.constant 0 : i32
    %c0_i32_0 = arith.constant 0 : i32
    %c0_i32_1 = arith.constant 0 : i32
    return %c0_i32, %c0_i32_0 : i32, i32
  }
  func.func @transform_2(%arg0: i32) -> (i32, i32) {
    %c0_i32 = arith.constant 0 : i32
    %c0_i32_0 = arith.constant 0 : i32
    %c0_i32_1 = arith.constant 0 : i32
    return %c0_i32, %c0_i32_0 : i32, i32
  }
  func.func @transform_3(%arg0: i32) -> (i32, i32) {
    %c0_i32 = arith.constant 0 : i32
    %c0_i32_0 = arith.constant 0 : i32
    return %arg0, %c0_i32 : i32, i32
  }
}

</mosaic_0001>

<llo_original>
// kernel: tpu_custom_call.1
$region0: #{tpu_custom_call.1}
  #allocation0 [shape = 'u32[]', space=smem, size = 0x4, offset = 0x4, fixed_abs, tag = 'smem constant byte address 0x4 - core index']
  #allocation1 [shape = 'u32[144,128]{1,0:T(1,128)}', space=vmem, size = 0x12000, scoped, tag = 'internal scratch']
  %s0 = inlined_call_operand.hbm [shape: bf16[32,128], index: 0, kind: input, shape index: {}]
  %s1 = inlined_call_operand.vmem [shape: f32[1,128], index: 1, kind: input, shape index: {}]
  %s2 = inlined_call_operand.vmem [shape: f32[1,128], index: 2, kind: input, shape index: {}]
  %s3 = inlined_call_operand.hbm [shape: bf16[32,128], index: 3, kind: output, shape index: {}]
  %s4 = sld [smem:[#allocation0]]
  $region26: #{tpu_custom_call.1} parent=0
    _
  %s6 = ssub.s32 1, %s4
  %s7 = scalar_select 0, %s6, %s4
  $region1: #{tpu_custom_call.1} parent=0
    #allocation2 [shape = 'u8[8192]{0}', space=vmem, size = 0x2000, scoped, tag = 'input window, operand 0, single buffered']
    #allocation3 [shape = 's32[1]{0}', space=sflag, size = 0x4, scoped, tag = 'scoped memory for tpu_custom_call.1']
    #allocation4 [shape = 's32[1]{0}', space=sflag, size = 0x4, scoped, tag = 'scoped memory for tpu_custom_call.1']
    #allocation5 [shape = 'u8[8192]{0}', space=vmem, size = 0x2000, scoped, tag = 'output window, operand 0, single buffered']
    %8 = vsyncpa [#allocation3], 0
    %9 = vsyncpa [#allocation4], 0
    // Predicated region
    $region2: #{tpu_custom_call.1} parent=1 // pred_check
      _
    $region3: #{tpu_custom_call.1} parent=1 // pred_check_branch
      %11 = sbr.rel (0) target = $region5
    $region4: #{tpu_custom_call.1} parent=1 // pred_region
      %s13 = ssub.s32 256, 256
      %14 = vsyncadd [#allocation3], %s13
      %s15 = sshll.u32 [#allocation2], 4
      %s16 = int_to_ptr.vmem [resolvable:$true] %s15
      %21 = dma.hbm_to_vmem [thread:$0]  %s0, 256, %s16, [#allocation3], 64, 64, 4
    $region5: #{tpu_custom_call.1} parent=1 // pred_fallthru
      _
    // Predicated region
    $region6: #{tpu_custom_call.1} parent=1 // pred_check
      _
    $region7: #{tpu_custom_call.1} parent=1 // pred_check_branch
      %23 = sbr.rel (0) target = $region9
    $region8: #{tpu_custom_call.1} parent=1 // pred_region
      _
    $region9: #{tpu_custom_call.1} parent=1 // pred_fallthru
      _
    // Predicated region
    $region10: #{tpu_custom_call.1} parent=1 // pred_check
      _
    $region11: #{tpu_custom_call.1} parent=1 // pred_check_branch
      %25 = sbr.rel (0) target = $region13
    $region12: #{tpu_custom_call.1} parent=1 // pred_region
      _
    $region13: #{tpu_custom_call.1} parent=1 // pred_fallthru
      _
    // Predicated region
    $region14: #{tpu_custom_call.1} parent=1 // pred_check
      _
    $region15: #{tpu_custom_call.1} parent=1 // pred_check_branch
      %27 = sbr.rel (0) target = $region17
    $region16: #{tpu_custom_call.1} parent=1 // pred_region
      %28 = dma.done [#allocation3], 256
    $region17: #{tpu_custom_call.1} parent=1 // pred_fallthru
      _
    %v29 = vld [vmem:[#allocation2] sm:$0xf]
    %v30 = vld [vmem:[#allocation2 + $0x4] sm:$0xf]
    %v31 = vld [vmem:[#allocation2 + $0x8] sm:$0xf]
    %v32 = vld [vmem:[#allocation2 + $0xc] sm:$0xf]
    %v33 = vunpack.c.l.bf16 %v29
    %v34 = vunpack.c.l.bf16 %v30
    %v35 = vunpack.c.l.bf16 %v31
    %v36 = vunpack.c.l.bf16 %v32
    %37 = vadd.xlane.f32.xlu0 %v33
    %v38 = vpop.xlane.xlu0 %37
    %39 = vadd.xlane.f32.xlu0 %v34
    %v40 = vpop.xlane.xlu0 %39
    %41 = vadd.xlane.f32.xlu0 %v35
    %v42 = vpop.xlane.xlu0 %41
    %43 = vadd.xlane.f32.xlu0 %v36
    %v44 = vpop.xlane.xlu0 %43
    %v45 = vrcp.pop 128.0
    %v46 = vmul.f32 %v38, %v45
    %v47 = vmul.f32 %v40, %v45
    %v48 = vmul.f32 %v42, %v45
    %v49 = vmul.f32 %v44, %v45
    %v50 = vsub.f32 %v33, %v46
    %v51 = vsub.f32 %v34, %v47
    %v52 = vsub.f32 %v35, %v48
    %v53 = vsub.f32 %v36, %v49
    %v54 = vmul.f32 %v50, %v50
    %v55 = vmul.f32 %v51, %v51
    %v56 = vmul.f32 %v52, %v52
    %v57 = vmul.f32 %v53, %v53
    %58 = vadd.xlane.f32.xlu0 %v54
    %v59 = vpop.xlane.xlu0 %58
    %60 = vadd.xlane.f32.xlu0 %v55
    %v61 = vpop.xlane.xlu0 %60
    %62 = vadd.xlane.f32.xlu0 %v56
    %v63 = vpop.xlane.xlu0 %62
    %64 = vadd.xlane.f32.xlu0 %v57
    %v65 = vpop.xlane.xlu0 %64
    %v66 = vmul.f32 %v59, %v45
    %v67 = vmul.f32 %v61, %v45
    %v68 = vmul.f32 %v63, %v45
    %v69 = vmul.f32 %v65, %v45
    %v70 = vadd.f32 %v66, 1e-12
    %v71 = vadd.f32 %v67, 1e-12
    %v72 = vadd.f32 %v68, 1e-12
    %v73 = vadd.f32 %v69, 1e-12
    %v74 = vrsqrt.pop %v70
    %v75 = vrsqrt.pop %v71
    %v76 = vrsqrt.pop %v72
    %v77 = vrsqrt.pop %v73
    %v78 = vmul.f32 %v50, %v74
    %v79 = vmul.f32 %v51, %v75
    %v80 = vmul.f32 %v52, %v76
    %v81 = vmul.f32 %v53, %v77
    %v82 = vld [vmem:[%s1] sm:$0x1]
    %v84 = vlaneseq
    %v85 = vshrl.u32 %v84, 7
    %v86 = vsub.s32 0, %v85
    %v87 = vrot.slane %v82, %v86
    %v89 = vmul.f32 %v78, %v87
    %v90 = vmul.f32 %v79, %v87
    %v91 = vmul.f32 %v80, %v87
    %v92 = vmul.f32 %v81, %v87
    %v93 = vld [vmem:[%s2] sm:$0x1]
    %v95 = vlaneseq
    %v96 = vshrl.u32 %v95, 7
    %v97 = vsub.s32 0, %v96
    %v98 = vrot.slane %v93, %v97
    %v100 = vadd.f32 %v89, %v98
    %v101 = vadd.f32 %v90, %v98
    %v102 = vadd.f32 %v91, %v98
    %v103 = vadd.f32 %v92, %v98
    %v104 = vpack.c.bf16 %v101, %v100
    %v105 = vpack.c.bf16 %v103, %v102
    %v108 = vunpack.c.l.b16 %v104
    %v109 = vunpack.c.h.b16 %v104
    %v110 = vunpack.c.l.b16 %v105
    %v111 = vunpack.c.h.b16 %v105
    %v112 = vpack.c.b16 %v108, %v108
    %v113 = vpack.c.b16 %v109, %v109
    %v114 = vpack.c.b16 %v110, %v110
    %v115 = vpack.c.b16 %v111, %v111
    %120 = vst [vmem:[#allocation5] sm:$0xf] %v112
    %121 = vst [vmem:[#allocation5 + $0x4] sm:$0xf] %v113
    %122 = vst [vmem:[#allocation5 + $0x8] sm:$0xf] %v114
    %123 = vst [vmem:[#allocation5 + $0xc] sm:$0xf] %v115
    // Predicated region
    $region18: #{tpu_custom_call.1} parent=1 // pred_check
      _
    $region19: #{tpu_custom_call.1} parent=1 // pred_check_branch
      %125 = sbr.rel (0) target = $region21
    $region20: #{tpu_custom_call.1} parent=1 // pred_region
      %s127 = ssub.s32 256, 256
      %128 = vsyncadd [#allocation4], %s127
      %s129 = sshll.u32 [#allocation5], 4
      %s130 = int_to_ptr.vmem [resolvable:$true] %s129
      %135 = dma.vmem_to_hbm [thread:$0]  %s130, 256, %s3, [#allocation4], 64, 64, 4
    $region21: #{tpu_custom_call.1} parent=1 // pred_fallthru
      _
    // Predicated region
    $region22: #{tpu_custom_call.1} parent=1 // pred_check
      _
    $region23: #{tpu_custom_call.1} parent=1 // pred_check_branch
      %137 = sbr.rel (0) target = $region25
    $region24: #{tpu_custom_call.1} parent=1 // pred_region
      %138 = dma.done [#allocation4], 256
    $region25: #{tpu_custom_call.1} parent=1 // pred_fallthru
      _
    %139 = vsyncpa [#allocation3], 1
    %140 = vsyncpa [#allocation4], 1

</llo_original>
